<compile_context>
chip_gen: v7x
topology: tpu7x:2x2x1
jax: 0.10.0
libtpu: 0.0.40
codegen_flags: <defaults>
</compile_context>

<pallas_src>
import functools

import jax
import jax.numpy as jnp
from jax.experimental import pallas as pl
from jax.experimental.pallas import tpu as pltpu


_TILE_BYTES = 2 * 1024 * 1024  # target HBM bytes per (double-buffered) logits tile


def _choose_block_rows(batch: int, num_classes: int, itemsize: int) -> int:
    """Largest batch tile (multiple of the sublane pack) within the byte budget."""
    sub = 16 if itemsize < 4 else 8  # bf16 packs 16 rows per vreg, f32 packs 8
    rows = (_TILE_BYTES // max(1, num_classes * itemsize)) // sub * sub
    rows = max(sub, rows)
    rows = min(rows, pl.cdiv(batch, sub) * sub)  # never exceed the (padded) batch
    return int(rows)


def _ce_label_smooth_kernel(logits_ref, targets_ref, loss_ref, *,
                            epsilon: float, num_classes: int,
                            batch_size: int, block_rows: int):
    # logits_ref : (TB, K) f32/bf16   targets_ref: (TB, 1) int32   loss_ref: (TB, 1) f32
    x = logits_ref[...].astype(jnp.float32)                      # (TB, K)
    t = targets_ref[...]                                         # (TB, 1)

    # Numerically-stable log-partition along the class (lane) axis.
    m = jnp.max(x, axis=1, keepdims=True)                        # (TB, 1)
    lse = jnp.log(jnp.sum(jnp.exp(x - m), axis=1, keepdims=True))
    log_z = m + lse                                              # (TB, 1)

    # Closed form of -sum(((1-eps)*onehot + eps/K) * log_softmax(x)):
    #   loss = log_z - (1-eps) * x[target] - (eps/K) * sum(x)
    cls_ids = jax.lax.broadcasted_iota(jnp.int32, x.shape, 1)    # (TB, K)
    x_tgt = jnp.sum(jnp.where(cls_ids == t, x, 0.0), axis=1, keepdims=True)
    x_sum = jnp.sum(x, axis=1, keepdims=True)

    loss = log_z - (1.0 - epsilon) * x_tgt - (epsilon / num_classes) * x_sum

    if batch_size % block_rows != 0:
        # Zero rows of the (padded) final tile that lie beyond the real batch.
        row = jax.lax.broadcasted_iota(jnp.int32, (x.shape[0], 1), 0)
        valid = (pl.program_id(0) * block_rows + row) < batch_size
        loss = jnp.where(valid, loss, 0.0)

    loss_ref[...] = loss


def cross_entropy_label_smooth(logits, targets, num_classes,
                               epsilon: float = 0.1, reduction: bool = True,
                               block_rows: int | None = None):
    """JAX/Pallas equivalent of CrossEntropyLabelSmooth.forward.

    Args:
      logits:  (B, K) prediction matrix (before softmax), f32 or bf16.
      targets: (B,) integer class labels.
    Returns:
      scalar mean loss if reduction=True, else (B,) per-sample losses (f32).
    """
    B, K = logits.shape
    assert K == num_classes
    itemsize = jnp.dtype(logits.dtype).itemsize

    tb = int(block_rows) if block_rows is not None else _choose_block_rows(B, K, itemsize)
    n_tiles = pl.cdiv(B, tb)

    targets_2d = targets.astype(jnp.int32).reshape(B, 1)

    kernel = functools.partial(
        _ce_label_smooth_kernel,
        epsilon=float(epsilon), num_classes=int(num_classes),
        batch_size=int(B), block_rows=tb)

    # Double-buffered input tiles + worst-case in-kernel f32 temporaries.
    vmem_limit = max(32 * 1024 * 1024, 2 * tb * K * itemsize + 6 * tb * K * 4)

    cost = pl.CostEstimate(
        flops=5 * B * K,
        transcendentals=B * K,
        bytes_accessed=B * K * itemsize + B * 4 + B * 4)

    per_sample = pl.pallas_call(
        kernel,
        out_shape=jax.ShapeDtypeStruct((B, 1), jnp.float32),
        grid=(n_tiles,),
        in_specs=[
            pl.BlockSpec((tb, K), lambda i: (i, 0)),   # logits tile
            pl.BlockSpec((tb, 1), lambda i: (i, 0)),   # targets tile
        ],
        out_specs=pl.BlockSpec((tb, 1), lambda i: (i, 0)),
        compiler_params=pltpu.CompilerParams(
            dimension_semantics=("parallel",),
            vmem_limit_bytes=int(vmem_limit)),
        cost_estimate=cost,
    )(logits, targets_2d)

    per_sample = per_sample[:, 0]
    if reduction:
        return jnp.mean(per_sample)     # mean over B floats — free in the wrapper
    return per_sample


if __name__ == "__main__":
    key = jax.random.PRNGKey(0)
    k1, k2, k3, k4 = jax.random.split(key, 4)

    def ref_loss(logits, targets, K, eps, reduction):
        lp = jax.nn.log_softmax(logits.astype(jnp.float32), axis=1)
        oh = jax.nn.one_hot(targets, K, dtype=jnp.float32)
        sm = (1.0 - eps) * oh + eps / K
        l = jnp.sum(-sm * lp, axis=1)
        return jnp.mean(l) if reduction else l

    # Case 1: small single-tile batch, mean reduction (f32).
    B, K = 8, 16
    logits = jax.random.normal(k1, (B, K), dtype=jnp.float32)
    targets = jax.random.randint(k2, (B,), 0, K, dtype=jnp.int32)
    out1 = jax.block_until_ready(
        cross_entropy_label_smooth(logits, targets, num_classes=K))
    ref1 = ref_loss(logits, targets, K, 0.1, True)
    assert jnp.allclose(out1, ref1, atol=1e-5, rtol=1e-5), (out1, ref1)

    # Case 2: multi-tile grid (forced small block), batch not a multiple of the
    # block (exercises padded-row masking), per-sample losses.
    B2, K2 = 20, 32
    logits2 = jax.random.normal(k3, (B2, K2), dtype=jnp.float32)
    targets2 = jax.random.randint(k4, (B2,), 0, K2, dtype=jnp.int32)
    out2 = jax.block_until_ready(
        cross_entropy_label_smooth(logits2, targets2, num_classes=K2,
                                   reduction=False, block_rows=8))
    ref2 = ref_loss(logits2, targets2, K2, 0.1, False)
    assert jnp.allclose(out2, ref2, atol=1e-5, rtol=1e-5), (out2, ref2)

    # Case 3: bf16 logits path (half the HBM bytes; f32 upcast inside the kernel).
    out3 = jax.block_until_ready(
        cross_entropy_label_smooth(logits2.astype(jnp.bfloat16), targets2,
                                   num_classes=K2))
    ref3 = ref_loss(logits2.astype(jnp.bfloat16), targets2, K2, 0.1, True)
    assert jnp.allclose(out3, ref3, atol=2e-2, rtol=2e-2), (out3, ref3)

    print("KERNEL_OK")
</pallas_src>

<mosaic_0001>
module attributes {stable_mosaic.version = 11 : i64} {
  func.func @_ce_label_smooth_kernel(%arg0: i32, %arg1: memref<8x16xf32, #tpu.memory_space<vmem>>, %arg2: memref<8x1xi32, #tpu.memory_space<vmem>>, %arg3: memref<8x1xf32, #tpu.memory_space<vmem>>) attributes {dimension_semantics = [#tpu.dimension_semantics<parallel>], iteration_bounds = array<i64: 1>, scalar_prefetch = 0 : i64, scratch_operands = 0 : i64, tpu.core_type = #tpu.core_type<tc>, window_params = [{transform_indices = @transform_0, window_bounds = array<i64: 8, 16>}, {transform_indices = @transform_1, window_bounds = array<i64: 8, 1>}, {transform_indices = @transform_2, window_bounds = array<i64: 8, 1>}]} {
    %c0 = arith.constant 0 : index
    %c0_0 = arith.constant 0 : index
    %0 = vector.load %arg1[%c0, %c0_0] : memref<8x16xf32, #tpu.memory_space<vmem>>, vector<8x16xf32>
    %c0_1 = arith.constant 0 : index
    %c0_2 = arith.constant 0 : index
    %1 = vector.load %arg2[%c0_1, %c0_2] : memref<8x1xi32, #tpu.memory_space<vmem>>, vector<8x1xi32>
    %cst = arith.constant dense<0xFF800000> : vector<8xf32>
    %2 = vector.multi_reduction <maximumf>, %0, %cst [1] : vector<8x16xf32> to vector<8xf32>
    %3 = vector.shape_cast %2 : vector<8xf32> to vector<8x1xf32>
    %4 = vector.broadcast %3 : vector<8x1xf32> to vector<8x16xf32>
    %5 = arith.subf %0, %4 : vector<8x16xf32>
    %6 = math.exp %5 : vector<8x16xf32>
    %cst_3 = arith.constant dense<0.000000e+00> : vector<8xf32>
    %7 = vector.multi_reduction <add>, %6, %cst_3 [1] : vector<8x16xf32> to vector<8xf32>
    %8 = vector.shape_cast %7 : vector<8xf32> to vector<8x1xf32>
    %9 = math.log %8 : vector<8x1xf32>
    %10 = arith.addf %3, %9 : vector<8x1xf32>
    %11 = tpu.iota {dimensions = array<i32: 1>} : vector<8x16xi32>
    %12 = vector.broadcast %1 : vector<8x1xi32> to vector<8x16xi32>
    %13 = arith.cmpi eq, %11, %12 : vector<8x16xi32>
    %cst_4 = arith.constant 0.000000e+00 : f32
    %14 = vector.broadcast %cst_4 : f32 to vector<8x16xf32>
    %15 = arith.select %13, %0, %14 : vector<8x16xi1>, vector<8x16xf32>
    %cst_5 = arith.constant dense<0.000000e+00> : vector<8xf32>
    %16 = vector.multi_reduction <add>, %15, %cst_5 [1] : vector<8x16xf32> to vector<8xf32>
    %17 = vector.shape_cast %16 : vector<8xf32> to vector<8x1xf32>
    %cst_6 = arith.constant dense<0.000000e+00> : vector<8xf32>
    %18 = vector.multi_reduction <add>, %0, %cst_6 [1] : vector<8x16xf32> to vector<8xf32>
    %19 = vector.shape_cast %18 : vector<8xf32> to vector<8x1xf32>
    %cst_7 = arith.constant 0.899999976 : f32
    %20 = vector.broadcast %cst_7 : f32 to vector<8x1xf32>
    %21 = arith.mulf %20, %17 : vector<8x1xf32>
    %22 = arith.subf %10, %21 : vector<8x1xf32>
    %cst_8 = arith.constant 6.250000e-03 : f32
    %23 = vector.broadcast %cst_8 : f32 to vector<8x1xf32>
    %24 = arith.mulf %23, %19 : vector<8x1xf32>
    %25 = arith.subf %22, %24 : vector<8x1xf32>
    %c0_9 = arith.constant 0 : index
    %c0_10 = arith.constant 0 : index
    %26 = vector.load %arg3[%c0_9, %c0_10] : memref<8x1xf32, #tpu.memory_space<vmem>>, vector<8x1xf32>
    tpu.vector_store %arg3[%c0_9, %c0_10], %25 {strides = array<i32>} : memref<8x1xf32, #tpu.memory_space<vmem>>, vector<8x1xf32>,
    return
  }
  func.func @transform_0(%arg0: i32) -> (i32, i32) {
    %c0_i32 = arith.constant 0 : i32
    %c0_i32_0 = arith.constant 0 : i32
    return %arg0, %c0_i32 : i32, i32
  }
  func.func @transform_1(%arg0: i32) -> (i32, i32) {
    %c0_i32 = arith.constant 0 : i32
    %c0_i32_0 = arith.constant 0 : i32
    return %arg0, %c0_i32 : i32, i32
  }
  func.func @transform_2(%arg0: i32) -> (i32, i32) {
    %c0_i32 = arith.constant 0 : i32
    %c0_i32_0 = arith.constant 0 : i32
    return %arg0, %c0_i32 : i32, i32
  }
}

</mosaic_0001>

<llo_original>
// kernel: tpu_custom_call.1
$region0: #{tpu_custom_call.1}
  #allocation0 [shape = 'u32[]', space=smem, size = 0x4, offset = 0x4, fixed_abs, tag = 'smem constant byte address 0x4 - core index']
  #allocation1 [shape = 'u32[144,128]{1,0:T(1,128)}', space=vmem, size = 0x12000, scoped, tag = 'internal scratch']
  %s0 = inlined_call_operand.vmem [shape: f32[8,16], index: 0, kind: input, shape index: {}]
  %s1 = inlined_call_operand.vmem [shape: s32[8,1], index: 1, kind: input, shape index: {}]
  %s2 = inlined_call_operand.vmem [shape: f32[8,1], index: 2, kind: output, shape index: {}]
  %s3 = sld [smem:[#allocation0]]
  $region18: #{tpu_custom_call.1} parent=0
    _
  %s5 = ssub.s32 1, %s3
  %s6 = scalar_select 0, %s5, %s3
  // Predicated region
  $region2: #{tpu_custom_call.1} parent=0 // pred_check
    _
  $region3: #{tpu_custom_call.1} parent=0 // pred_check_branch
    %8 = sbr.rel (0) target = $region5
  $region4: #{tpu_custom_call.1} parent=0 // pred_region
    _
  $region5: #{tpu_custom_call.1} parent=0 // pred_fallthru
    _
  // Predicated region
  $region6: #{tpu_custom_call.1} parent=0 // pred_check
    _
  $region7: #{tpu_custom_call.1} parent=0 // pred_check_branch
    %10 = sbr.rel (0) target = $region9
  $region8: #{tpu_custom_call.1} parent=0 // pred_region
    _
  $region9: #{tpu_custom_call.1} parent=0 // pred_fallthru
    _
  %v11 = vld [vmem:[%s0] sm:$0xff]
  %v12 = vld [vmem:[%s1] sm:$0xff]
  %vm13 = vcmask 130048
  %v14 = vsel %vm13, %v11, -inf
  %15 = vmax.xlane.f32.xlu0 %v14
  %v16 = vpop.xlane.xlu0 %15
  %v17 = vsub.f32 %v11, %v16
  %v18 = vmul.f32 %v17, 1.442695
  %v19 = vpow.pop %v18
  %v20 = vsel %vm13, %v19, 0.0
  %21 = vadd.xlane.f32.xlu0 %v20
  %v22 = vpop.xlane.xlu0 %21
  %v23 = vlog2.pop %v22
  %v24 = vmul.f32 %v23, 0.6931472
  %v25 = vadd.f32 %v16, %v24
  %v26 = vlaneseq
  %v27 = vand.u32 %v26, 127
  %28 = vset.pattern.permute.xlu0 0
  %29 = vperm.xlu0 %28, %v12
  %v30 = vpop.permute.xlu0 %29
  %vm31 = vcmp.eq.s32.totalorder %v27, %v30
  %v32 = vsel %vm31, %v11, 0.0
  %v33 = vsel %vm13, %v32, 0.0
  %34 = vadd.xlane.f32.xlu0 %v33
  %v35 = vpop.xlane.xlu0 %34
  %v36 = vsel %vm13, %v11, 0.0
  %37 = vadd.xlane.f32.xlu0 %v36
  %v38 = vpop.xlane.xlu0 %37
  %v39 = vmul.f32 %v35, 0.9
  %v40 = vsub.f32 %v25, %v39
  %v41 = vmul.f32 %v38, 0.00625
  %v42 = vsub.f32 %v40, %v41
  %vm43 = vcmask 7168
  %44 = vst.msk [vmem:[%s2] sm:$0xff] %vm43, %v42
  // Predicated region
  $region10: #{tpu_custom_call.1} parent=0 // pred_check
    _
  $region11: #{tpu_custom_call.1} parent=0 // pred_check_branch
    %46 = sbr.rel (0) target = $region13
  $region12: #{tpu_custom_call.1} parent=0 // pred_region
    _
  $region13: #{tpu_custom_call.1} parent=0 // pred_fallthru
    _
  // Predicated region
  $region14: #{tpu_custom_call.1} parent=0 // pred_check
    _
  $region15: #{tpu_custom_call.1} parent=0 // pred_check_branch
    %48 = sbr.rel (0) target = $region17
  $region16: #{tpu_custom_call.1} parent=0 // pred_region
    _
  $region17: #{tpu_custom_call.1} parent=0 // pred_fallthru
    _

</llo_original>
